<compile_context>
chip_gen: v5e
topology: v5e:2x2
jax: 0.10.0
libtpu: 0.0.40
codegen_flags: <defaults>
</compile_context>

<pallas_src>
import jax
import jax.numpy as jnp
from jax.experimental import pallas as pl
from jax.experimental.pallas import tpu as pltpu

HIDDEN = 100        # logical hidden width (matches the PyTorch module)
HIDDEN_PAD = 128    # padded to the 128-lane vreg width
ROW = 128           # batch rows packed into one lane-dense output row


def mlp_kernel(x_ref, w1_ref, b1_ref, w2_ref, b2_ref, w3_ref, b3_ref, o_ref):
    # Layer 1: bf16 MXU matmul, f32 accumulation; bias + ReLU in f32 (VPU).
    x_bf = x_ref[...].astype(jnp.bfloat16)                      # (tb, F)
    h1 = jnp.dot(x_bf, w1_ref[...], preferred_element_type=jnp.float32)
    h1 = jnp.maximum(h1 + b1_ref[...], 0.0)                     # (tb, 128)

    # Layer 2: (tb,128) @ (128,128), same pattern.
    h2 = jnp.dot(h1.astype(jnp.bfloat16), w2_ref[...],
                 preferred_element_type=jnp.float32)
    h2 = jnp.maximum(h2 + b2_ref[...], 0.0)                     # (tb, 128) f32

    # Output layer, packed lane-dense.  w3_ref is (8,128) f32 with the real
    # weights in row 0 and zeros elsewhere.  For every 128-row chunk g of the
    # batch tile we compute  w3 @ h2_g^T  -> row 0 holds the 128 logits for
    # that chunk, laid out across lanes.  b3 is a scalar read from SMEM.
    b3 = b3_ref[0]
    nrow = o_ref.shape[0]                                       # = tb // 128 (static)
    for g in range(nrow):
        h2g = h2[g * ROW:(g + 1) * ROW, :]                      # (128, 128)
        zg = jnp.dot(w3_ref[...], h2g.T,
                     preferred_element_type=jnp.float32)        # (8, 128); rows 1..7 are 0
        sig = jax.nn.sigmoid(zg[0:1, :] + b3)                   # (1, 128), EUP
        o_ref[pl.ds(g, 1), :] = sig                             # lane-dense row store


def mlp_forward(x, w1, b1, w2, b2, w3, b3, *, tb=None):
    """x: (B, F) f32. Weights are the padded/packed params from pad_and_pack_params.

    Output: (B, 1) f32 sigmoid probabilities.
    """
    B, F = x.shape
    if tb is None:
        # Single grid step for batches up to 1024 rows; 1024-row tiles beyond
        # that (keeps the packed-output block at (8,128), per-step overhead
        # amortized over >= 8 MXU-filling matmuls).
        b128 = ((B + ROW - 1) // ROW) * ROW
        tb = b128 if b128 <= 1024 else 1024
    assert tb % ROW == 0

    b_pad = pl.cdiv(B, tb) * tb
    if b_pad != B:
        x = jnp.pad(x, ((0, b_pad - B), (0, 0)))
    num_tiles = b_pad // tb
    nrow = tb // ROW
    out_rows = b_pad // ROW

    def full_spec(a):
        # Full-array, grid-invariant block -> fetched once, stays VMEM-resident.
        return pl.BlockSpec(a.shape, lambda i, _nd=a.ndim: (0,) * _nd)

    # Advisory cost so XLA schedules this tiny custom call sensibly.
    flops = 2 * b_pad * (F * HIDDEN_PAD + HIDDEN_PAD * HIDDEN_PAD + HIDDEN_PAD)
    bytes_accessed = (b_pad * F * 4 + out_rows * ROW * 4
                      + w1.size * 2 + w2.size * 2
                      + (b1.size + b2.size + w3.size + b3.size) * 4)
    cost = pl.CostEstimate(flops=int(flops), transcendentals=int(b_pad),
                           bytes_accessed=int(bytes_accessed))

    out = pl.pallas_call(
        mlp_kernel,
        out_shape=jax.ShapeDtypeStruct((out_rows, ROW), jnp.float32),
        grid_spec=pltpu.PrefetchScalarGridSpec(
            num_scalar_prefetch=0,
            grid=(num_tiles,),
            in_specs=[
                pl.BlockSpec((tb, F), lambda i: (i, 0)),     # activations, tiled on batch
                full_spec(w1), full_spec(b1),
                full_spec(w2), full_spec(b2),
                full_spec(w3),
                pl.BlockSpec(memory_space=pltpu.MemorySpace.SMEM),   # b3 scalar
            ],
            out_specs=pl.BlockSpec((nrow, ROW), lambda i: (i, 0)),
        ),
        compiler_params=pltpu.CompilerParams(
            dimension_semantics=(("parallel",) if num_tiles > 1 else ("arbitrary",))),
        cost_estimate=cost,
    )(x, w1, b1, w2, b2, w3, b3)

    # (b_pad/128, 128) row-major == original batch order; slice off padding.
    return out.reshape(-1)[:B].reshape(B, 1)


def init_linear(key, fan_in, fan_out):
    # Matches torch.nn.Linear default init: U(-1/sqrt(fan_in), 1/sqrt(fan_in)).
    kw, kb = jax.random.split(key)
    bound = 1.0 / jnp.sqrt(float(fan_in))
    w = jax.random.uniform(kw, (fan_in, fan_out), jnp.float32, -bound, bound)
    b = jax.random.uniform(kb, (1, fan_out), jnp.float32, -bound, bound)
    return w, b


def pad_and_pack_params(w1, b1, w2, b2, w3, b3):
    """Zero-pad hidden 100 -> 128 and lay params out for the kernel.

    MXU weights (w1, w2) are stored bf16; biases / output row stay f32.
    w3 is stored as an (8, 128) f32 block (row 0 = real weights, rest zero) so
    the final layer is a clean 8-sublane MXU matmul; b3 becomes a 1-element
    f32 SMEM scalar.  Zero padding is exact: padded hidden units compute
    ReLU(0)=0 and contribute 0 downstream.
    """
    hp = HIDDEN_PAD - HIDDEN
    w1p = jnp.pad(w1, ((0, 0), (0, hp))).astype(jnp.bfloat16)    # (F, 128)   bf16
    b1p = jnp.pad(b1, ((0, 0), (0, hp)))                         # (1, 128)   f32
    w2p = jnp.pad(w2, ((0, hp), (0, hp))).astype(jnp.bfloat16)   # (128, 128) bf16
    b2p = jnp.pad(b2, ((0, 0), (0, hp)))                         # (1, 128)   f32
    w3p = jnp.pad(w3.T, ((0, 7), (0, hp)))                       # (8, 128)   f32, row 0 real
    b3p = b3.reshape(-1).astype(jnp.float32)                     # (1,)       f32 SMEM scalar
    return w1p, b1p, w2p, b2p, w3p, b3p


if __name__ == "__main__":
    key = jax.random.PRNGKey(0)
    k_x, k1, k2, k3 = jax.random.split(key, 4)

    BATCH = 30       # not a multiple of 128 -> exercises batch padding
    FEATURES = 8     # train_x.shape[1] — Titanic-style feature count

    x = jax.random.normal(k_x, (BATCH, FEATURES), dtype=jnp.float32)

    w1, b1 = init_linear(k1, FEATURES, HIDDEN)
    w2, b2 = init_linear(k2, HIDDEN, HIDDEN)
    w3, b3 = init_linear(k3, HIDDEN, 1)

    w1p, b1p, w2p, b2p, w3p, b3p = pad_and_pack_params(w1, b1, w2, b2, w3, b3)

    out = mlp_forward(x, w1p, b1p, w2p, b2p, w3p, b3p)
    out = jax.block_until_ready(out)
    assert out.shape == (BATCH, 1)

    # Reference 1: pure-JAX mirror of the kernel math (bf16 dot inputs, f32 accum,
    # f32 output layer).  Small tolerance covers MXU f32 pass differences.
    h1 = jnp.maximum(jnp.dot(x.astype(jnp.bfloat16), w1p,
                             preferred_element_type=jnp.float32) + b1p, 0.0)
    h2 = jnp.maximum(jnp.dot(h1.astype(jnp.bfloat16), w2p,
                             preferred_element_type=jnp.float32) + b2p, 0.0)
    z_ref = jnp.sum(h2 * w3p[0:1, :], axis=-1, keepdims=True) + b3p[0]
    ref_bf16 = jax.nn.sigmoid(z_ref)
    assert jnp.allclose(out, ref_bf16, atol=2e-3, rtol=2e-3), \
        float(jnp.max(jnp.abs(out - ref_bf16)))

    # Reference 2: original full-f32 PyTorch semantics (loose tol for bf16 weights).
    h1f = jnp.maximum(x @ w1 + b1, 0.0)
    h2f = jnp.maximum(h1f @ w2 + b2, 0.0)
    ref_f32 = jax.nn.sigmoid(h2f @ w3 + b3)
    assert jnp.allclose(out, ref_f32, atol=5e-2), \
        float(jnp.max(jnp.abs(out - ref_f32)))

    print("KERNEL_OK")
</pallas_src>

<mosaic_0001>
module attributes {stable_mosaic.version = 11 : i64} {
  func.func @mlp_kernel(%arg0: i32, %arg1: memref<128x8xf32, #tpu.memory_space<vmem>>, %arg2: memref<8x128xbf16, #tpu.memory_space<vmem>>, %arg3: memref<1x128xf32, #tpu.memory_space<vmem>>, %arg4: memref<128x128xbf16, #tpu.memory_space<vmem>>, %arg5: memref<1x128xf32, #tpu.memory_space<vmem>>, %arg6: memref<8x128xf32, #tpu.memory_space<vmem>>, %arg7: memref<1xf32, #tpu.memory_space<smem>>, %arg8: memref<1x128xf32, #tpu.memory_space<vmem>>) attributes {dimension_semantics = [#tpu.dimension_semantics<arbitrary>], iteration_bounds = array<i64: 1>, scalar_prefetch = 0 : i64, scratch_operands = 0 : i64, tpu.core_type = #tpu.core_type<tc>, window_params = [{transform_indices = @transform_0, window_bounds = array<i64: 128, 8>}, {pipeline_mode = #tpu.pipeline_mode<synchronous>, transform_indices = @transform_1, window_bounds = array<i64: 8, 128>}, {pipeline_mode = #tpu.pipeline_mode<synchronous>, transform_indices = @transform_2, window_bounds = array<i64: 1, 128>}, {pipeline_mode = #tpu.pipeline_mode<synchronous>, transform_indices = @transform_3, window_bounds = array<i64: 128, 128>}, {pipeline_mode = #tpu.pipeline_mode<synchronous>, transform_indices = @transform_4, window_bounds = array<i64: 1, 128>}, {pipeline_mode = #tpu.pipeline_mode<synchronous>, transform_indices = @transform_5, window_bounds = array<i64: 8, 128>}, {transform_indices = @transform_6, window_bounds = array<i64: 1>}, {transform_indices = @transform_7, window_bounds = array<i64: 1, 128>}]} {
    %c0 = arith.constant 0 : index
    %c0_0 = arith.constant 0 : index
    %0 = vector.load %arg1[%c0, %c0_0] : memref<128x8xf32, #tpu.memory_space<vmem>>, vector<128x8xf32>
    %1 = arith.truncf %0 : vector<128x8xf32> to vector<128x8xbf16>
    %c0_1 = arith.constant 0 : index
    %c0_2 = arith.constant 0 : index
    %2 = vector.load %arg2[%c0_1, %c0_2] : memref<8x128xbf16, #tpu.memory_space<vmem>>, vector<8x128xbf16>
    %cst = arith.constant dense<0.000000e+00> : vector<128x128xf32>
    %3 = tpu.matmul %1, %2, %cst {dimension_numbers = #tpu.dot_dimension_numbers<[1], [0], [0], [1], [0, 0, 1, 1], [], []>} : vector<128x8xbf16>, vector<8x128xbf16>, vector<128x128xf32> -> vector<128x128xf32>
    %c0_3 = arith.constant 0 : index
    %c0_4 = arith.constant 0 : index
    %4 = vector.load %arg3[%c0_3, %c0_4] : memref<1x128xf32, #tpu.memory_space<vmem>>, vector<1x128xf32>
    %5 = vector.broadcast %4 : vector<1x128xf32> to vector<128x128xf32>
    %6 = arith.addf %3, %5 : vector<128x128xf32>
    %cst_5 = arith.constant 0.000000e+00 : f32
    %7 = vector.broadcast %cst_5 : f32 to vector<128x128xf32>
    %8 = arith.maximumf %6, %7 : vector<128x128xf32>
    %9 = arith.truncf %8 : vector<128x128xf32> to vector<128x128xbf16>
    %c0_6 = arith.constant 0 : index
    %c0_7 = arith.constant 0 : index
    %10 = vector.load %arg4[%c0_6, %c0_7] : memref<128x128xbf16, #tpu.memory_space<vmem>>, vector<128x128xbf16>
    %cst_8 = arith.constant dense<0.000000e+00> : vector<128x128xf32>
    %11 = tpu.matmul %9, %10, %cst_8 {dimension_numbers = #tpu.dot_dimension_numbers<[1], [0], [0], [1], [0, 0, 1, 1], [], []>} : vector<128x128xbf16>, vector<128x128xbf16>, vector<128x128xf32> -> vector<128x128xf32>
    %c0_9 = arith.constant 0 : index
    %c0_10 = arith.constant 0 : index
    %12 = vector.load %arg5[%c0_9, %c0_10] : memref<1x128xf32, #tpu.memory_space<vmem>>, vector<1x128xf32>
    %13 = vector.broadcast %12 : vector<1x128xf32> to vector<128x128xf32>
    %14 = arith.addf %11, %13 : vector<128x128xf32>
    %cst_11 = arith.constant 0.000000e+00 : f32
    %15 = vector.broadcast %cst_11 : f32 to vector<128x128xf32>
    %16 = arith.maximumf %14, %15 : vector<128x128xf32>
    %c0_12 = arith.constant 0 : index
    %17 = memref.load %arg7[%c0_12] : memref<1xf32, #tpu.memory_space<smem>>
    %c0_13 = arith.constant 0 : index
    %c0_14 = arith.constant 0 : index
    %18 = vector.load %arg6[%c0_13, %c0_14] : memref<8x128xf32, #tpu.memory_space<vmem>>, vector<8x128xf32>
    %19 = tpu.transpose %16, [1, 0] : vector<128x128xf32> -> vector<128x128xf32>
    %cst_15 = arith.constant dense<0.000000e+00> : vector<8x128xf32>
    %20 = tpu.matmul %18, %19, %cst_15 {dimension_numbers = #tpu.dot_dimension_numbers<[1], [0], [0], [1], [0, 0, 1, 1], [], []>} : vector<8x128xf32>, vector<128x128xf32>, vector<8x128xf32> -> vector<8x128xf32>
    %21 = vector.extract_strided_slice %20 {offsets = [0, 0], sizes = [1, 128], strides = [1, 1]} : vector<8x128xf32> to vector<1x128xf32>
    %22 = vector.broadcast %17 : f32 to vector<1x128xf32>
    %23 = arith.addf %21, %22 : vector<1x128xf32>
    %24 = arith.negf %23 : vector<1x128xf32>
    %25 = math.exp %24 : vector<1x128xf32>
    %cst_16 = arith.constant 1.000000e+00 : f32
    %26 = vector.broadcast %cst_16 : f32 to vector<1x128xf32>
    %27 = arith.addf %26, %25 : vector<1x128xf32>
    %28 = arith.divf %26, %27 : vector<1x128xf32>
    %c0_17 = arith.constant 0 : index
    %c0_18 = arith.constant 0 : index
    %29 = vector.load %arg8[%c0_17, %c0_18] : memref<1x128xf32, #tpu.memory_space<vmem>>, vector<1x128xf32>
    tpu.vector_store %arg8[%c0_17, %c0_18], %28 {strides = array<i32>} : memref<1x128xf32, #tpu.memory_space<vmem>>, vector<1x128xf32>,
    return
  }
  func.func @transform_0(%arg0: i32) -> (i32, i32) {
    %c0_i32 = arith.constant 0 : i32
    %c0_i32_0 = arith.constant 0 : i32
    return %arg0, %c0_i32 : i32, i32
  }
  func.func @transform_1(%arg0: i32) -> (i32, i32) {
    %c0_i32 = arith.constant 0 : i32
    %c0_i32_0 = arith.constant 0 : i32
    %c0_i32_1 = arith.constant 0 : i32
    return %c0_i32, %c0_i32_0 : i32, i32
  }
  func.func @transform_2(%arg0: i32) -> (i32, i32) {
    %c0_i32 = arith.constant 0 : i32
    %c0_i32_0 = arith.constant 0 : i32
    %c0_i32_1 = arith.constant 0 : i32
    return %c0_i32, %c0_i32_0 : i32, i32
  }
  func.func @transform_3(%arg0: i32) -> (i32, i32) {
    %c0_i32 = arith.constant 0 : i32
    %c0_i32_0 = arith.constant 0 : i32
    %c0_i32_1 = arith.constant 0 : i32
    return %c0_i32, %c0_i32_0 : i32, i32
  }
  func.func @transform_4(%arg0: i32) -> (i32, i32) {
    %c0_i32 = arith.constant 0 : i32
    %c0_i32_0 = arith.constant 0 : i32
    %c0_i32_1 = arith.constant 0 : i32
    return %c0_i32, %c0_i32_0 : i32, i32
  }
  func.func @transform_5(%arg0: i32) -> (i32, i32) {
    %c0_i32 = arith.constant 0 : i32
    %c0_i32_0 = arith.constant 0 : i32
    %c0_i32_1 = arith.constant 0 : i32
    return %c0_i32, %c0_i32_0 : i32, i32
  }
  func.func @transform_6(%arg0: i32) -> i32 {
    %c0_i32 = arith.constant 0 : i32
    %c0_i32_0 = arith.constant 0 : i32
    return %c0_i32 : i32
  }
  func.func @transform_7(%arg0: i32) -> (i32, i32) {
    %c0_i32 = arith.constant 0 : i32
    %c0_i32_0 = arith.constant 0 : i32
    return %arg0, %c0_i32 : i32, i32
  }
}

</mosaic_0001>

<llo_original>
// kernel: tpu_custom_call.1
$region0: #{tpu_custom_call.1}
  #allocation0 [shape = 'u32[]', space=smem, size = 0x4, offset = 0x4, fixed_abs, tag = 'smem constant byte address 0x4 - core index']
  #allocation1 [shape = 'u32[72,128]{1,0:T(1,128)}', space=vmem, size = 0x9000, scoped, tag = 'internal scratch']
  #allocation2 [shape = 'f32[1]{0:T(128)S(6)}', space=smem, size = 0x200, scoped, tag = 'scoped memory for tpu_custom_call.1']
  %s0 = inlined_call_operand.vmem [shape: f32[128,8], index: 0, kind: input, shape index: {}]
  %s1 = inlined_call_operand.vmem [shape: bf16[8,128], index: 1, kind: input, shape index: {}]
  %s2 = inlined_call_operand.vmem [shape: f32[1,128], index: 2, kind: input, shape index: {}]
  %s3 = inlined_call_operand.vmem [shape: bf16[128,128], index: 3, kind: input, shape index: {}]
  %s4 = inlined_call_operand.vmem [shape: f32[1,128], index: 4, kind: input, shape index: {}]
  %s5 = inlined_call_operand.vmem [shape: f32[8,128], index: 5, kind: input, shape index: {}]
  %s6 = inlined_call_operand.<no memory space> [shape: f32[1], index: 6, kind: input, shape index: {}]
  %s7 = inlined_call_operand.hbm [shape: f32[1,128], index: 7, kind: output, shape index: {}]
  %s8 = sld [smem:[#allocation0]]
  $region38: #{tpu_custom_call.1} parent=0
    _
  %s10 = ssub.s32 1, %s8
  %s11 = scalar_select 0, %s10, %s8
  %12 = sst [smem:[#allocation2]] %s6
  $region1: #{tpu_custom_call.1} parent=0
    #allocation3 [shape = 'u8[512]{0}', space=vmem, size = 0x400, scoped, tag = 'output window, operand 0, single buffered']
    #allocation4 [shape = 's32[1]{0}', space=sflag, size = 0x4, scoped, tag = 'scoped memory for tpu_custom_call.1']
    %13 = vsyncpa [#allocation4], 0
    // Predicated region
    $region2: #{tpu_custom_call.1} parent=1 // pred_check
      _
    $region3: #{tpu_custom_call.1} parent=1 // pred_check_branch
      %15 = sbr.rel (0) target = $region5
    $region4: #{tpu_custom_call.1} parent=1 // pred_region
      _
    $region5: #{tpu_custom_call.1} parent=1 // pred_fallthru
      _
    // Predicated region
    $region6: #{tpu_custom_call.1} parent=1 // pred_check
      _
    $region7: #{tpu_custom_call.1} parent=1 // pred_check_branch
      %17 = sbr.rel (0) target = $region9
    $region8: #{tpu_custom_call.1} parent=1 // pred_region
      _
    $region9: #{tpu_custom_call.1} parent=1 // pred_fallthru
      _
    // Predicated region
    $region10: #{tpu_custom_call.1} parent=1 // pred_check
      _
    $region11: #{tpu_custom_call.1} parent=1 // pred_check_branch
      %19 = sbr.rel (0) target = $region13
    $region12: #{tpu_custom_call.1} parent=1 // pred_region
      _
    $region13: #{tpu_custom_call.1} parent=1 // pred_fallthru
      _
    // Predicated region
    $region14: #{tpu_custom_call.1} parent=1 // pred_check
      _
    $region15: #{tpu_custom_call.1} parent=1 // pred_check_branch
      %21 = sbr.rel (0) target = $region17
    $region16: #{tpu_custom_call.1} parent=1 // pred_region
      _
    $region17: #{tpu_custom_call.1} parent=1 // pred_fallthru
      _
    // Predicated region
    $region18: #{tpu_custom_call.1} parent=1 // pred_check
      _
    $region19: #{tpu_custom_call.1} parent=1 // pred_check_branch
      %23 = sbr.rel (0) target = $region21
    $region20: #{tpu_custom_call.1} parent=1 // pred_region
      _
    $region21: #{tpu_custom_call.1} parent=1 // pred_fallthru
      _
    // Predicated region
    $region22: #{tpu_custom_call.1} parent=1 // pred_check
      _
    $region23: #{tpu_custom_call.1} parent=1 // pred_check_branch
      %25 = sbr.rel (0) target = $region25
    $region24: #{tpu_custom_call.1} parent=1 // pred_region
      _
    $region25: #{tpu_custom_call.1} parent=1 // pred_fallthru
      _
    // Predicated region
    $region26: #{tpu_custom_call.1} parent=1 // pred_check
      _
    $region27: #{tpu_custom_call.1} parent=1 // pred_check_branch
      %27 = sbr.rel (0) target = $region29
    $region28: #{tpu_custom_call.1} parent=1 // pred_region
      _
    $region29: #{tpu_custom_call.1} parent=1 // pred_fallthru
      _
    %v29 = vld [vmem:[%s0] sm:$0xff]
    %v30 = vld [vmem:[%s0 + $0x8] sm:$0xff]
    %v31 = vld [vmem:[%s0 + $0x10] sm:$0xff]
    %v32 = vld [vmem:[%s0 + $0x18] sm:$0xff]
    %v33 = vld [vmem:[%s0 + $0x20] sm:$0xff]
    %v34 = vld [vmem:[%s0 + $0x28] sm:$0xff]
    %v35 = vld [vmem:[%s0 + $0x30] sm:$0xff]
    %v36 = vld [vmem:[%s0 + $0x38] sm:$0xff]
    %v37 = vld [vmem:[%s0 + $0x40] sm:$0xff]
    %v38 = vld [vmem:[%s0 + $0x48] sm:$0xff]
    %v39 = vld [vmem:[%s0 + $0x50] sm:$0xff]
    %v40 = vld [vmem:[%s0 + $0x58] sm:$0xff]
    %v41 = vld [vmem:[%s0 + $0x60] sm:$0xff]
    %v42 = vld [vmem:[%s0 + $0x68] sm:$0xff]
    %v43 = vld [vmem:[%s0 + $0x70] sm:$0xff]
    %v44 = vld [vmem:[%s0 + $0x78] sm:$0xff]
    %v45 = vpack.c.bf16 %v30, %v29
    %v46 = vpack.c.bf16 %v32, %v31
    %v47 = vpack.c.bf16 %v34, %v33
    %v48 = vpack.c.bf16 %v36, %v35
    %v49 = vpack.c.bf16 %v38, %v37
    %v50 = vpack.c.bf16 %v40, %v39
    %v51 = vpack.c.bf16 %v42, %v41
    %v52 = vpack.c.bf16 %v44, %v43
    %v53 = vld [vmem:[%s1] sm:$0xf]
    %v54 = vld [vmem:[%s2] sm:$0x1]
    %v56 = vperm.slane %v54, 0
    %vm58 = vcmask 64512
    %v60 = vsel %vm58, %v45, 0
    %v63 = vsel %vm58, %v46, 0
    %v66 = vsel %vm58, %v47, 0
    %v69 = vsel %vm58, %v48, 0
    %v72 = vsel %vm58, %v49, 0
    %v75 = vsel %vm58, %v50, 0
    %v78 = vsel %vm58, %v51, 0
    %v81 = vsel %vm58, %v52, 0
    %vm83 = vcmask 1043456
    %v85 = vsel %vm83, %v53, 0
    %87 = vmatpush.bf16.msra.mxu0 0
    %88 = vmatpush.bf16.msra.mxu0 0
    %89 = vmatpush.bf16.msra.mxu0 0
    %90 = vmatpush.bf16.msra.mxu0 0
    %91 = vmatpush.bf16.msra.mxu0 0
    %92 = vmatpush.bf16.msra.mxu0 0
    %93 = vmatpush.bf16.msra.mxu0 0
    %94 = vmatpush.bf16.msra.mxu0 %v85
    %95 = vmatmul.bf16.gmra.mxu0 %v60
    %v96 = vpop.f32.mrf.mxu0
    %v97 = vadd.f32 %v56, %v96
    %v98 = vpop.f32.mrf.mxu0
    %v99 = vadd.f32 %v56, %v98
    %100 = vmatmul.bf16.gmra.mxu0 %v63
    %v101 = vpop.f32.mrf.mxu0
    %v102 = vadd.f32 %v56, %v101
    %v103 = vpop.f32.mrf.mxu0
    %v104 = vadd.f32 %v56, %v103
    %105 = vmatmul.bf16.gmra.mxu0 %v66
    %v106 = vpop.f32.mrf.mxu0
    %v107 = vadd.f32 %v56, %v106
    %v108 = vpop.f32.mrf.mxu0
    %v109 = vadd.f32 %v56, %v108
    %110 = vmatmul.bf16.gmra.mxu0 %v69
    %v111 = vpop.f32.mrf.mxu0
    %v112 = vadd.f32 %v56, %v111
    %v113 = vpop.f32.mrf.mxu0
    %v114 = vadd.f32 %v56, %v113
    %115 = vmatmul.bf16.gmra.mxu0 %v72
    %v116 = vpop.f32.mrf.mxu0
    %v117 = vadd.f32 %v56, %v116
    %v118 = vpop.f32.mrf.mxu0
    %v119 = vadd.f32 %v56, %v118
    %120 = vmatmul.bf16.gmra.mxu0 %v75
    %v121 = vpop.f32.mrf.mxu0
    %v122 = vadd.f32 %v56, %v121
    %v123 = vpop.f32.mrf.mxu0
    %v124 = vadd.f32 %v56, %v123
    %125 = vmatmul.bf16.gmra.mxu0 %v78
    %v126 = vpop.f32.mrf.mxu0
    %v127 = vadd.f32 %v56, %v126
    %v128 = vpop.f32.mrf.mxu0
    %v129 = vadd.f32 %v56, %v128
    %130 = vmatmul.bf16.gmra.mxu0 %v81
    %v131 = vpop.f32.mrf.mxu0
    %v132 = vadd.f32 %v56, %v131
    %v133 = vpop.f32.mrf.mxu0
    %v134 = vadd.f32 %v56, %v133
    %135 = vdwg.mxu0
    %v136 = vmax.f32 %v97, 0.0
    %v137 = vmax.f32 %v99, 0.0
    %v138 = vmax.f32 %v102, 0.0
    %v139 = vmax.f32 %v104, 0.0
    %v140 = vmax.f32 %v107, 0.0
    %v141 = vmax.f32 %v109, 0.0
    %v142 = vmax.f32 %v112, 0.0
    %v143 = vmax.f32 %v114, 0.0
    %v144 = vmax.f32 %v117, 0.0
    %v145 = vmax.f32 %v119, 0.0
    %v146 = vmax.f32 %v122, 0.0
    %v147 = vmax.f32 %v124, 0.0
    %v148 = vmax.f32 %v127, 0.0
    %v149 = vmax.f32 %v129, 0.0
    %v150 = vmax.f32 %v132, 0.0
    %v151 = vmax.f32 %v134, 0.0
    %v152 = vpack.c.bf16 %v137, %v136
    %v153 = vpack.c.bf16 %v139, %v138
    %v154 = vpack.c.bf16 %v141, %v140
    %v155 = vpack.c.bf16 %v143, %v142
    %v156 = vpack.c.bf16 %v145, %v144
    %v157 = vpack.c.bf16 %v147, %v146
    %v158 = vpack.c.bf16 %v149, %v148
    %v159 = vpack.c.bf16 %v151, %v150
    %v160 = vld [vmem:[%s3] sm:$0xf]
    %v161 = vld [vmem:[%s3 + $0x4] sm:$0xf]
    %v162 = vld [vmem:[%s3 + $0x8] sm:$0xf]
    %v163 = vld [vmem:[%s3 + $0xc] sm:$0xf]
    %v164 = vld [vmem:[%s3 + $0x10] sm:$0xf]
    %v165 = vld [vmem:[%s3 + $0x14] sm:$0xf]
    %v166 = vld [vmem:[%s3 + $0x18] sm:$0xf]
    %v167 = vld [vmem:[%s3 + $0x1c] sm:$0xf]
    %v168 = vld [vmem:[%s3 + $0x20] sm:$0xf]
    %v169 = vld [vmem:[%s3 + $0x24] sm:$0xf]
    %v170 = vld [vmem:[%s3 + $0x28] sm:$0xf]
    %v171 = vld [vmem:[%s3 + $0x2c] sm:$0xf]
    %v172 = vld [vmem:[%s3 + $0x30] sm:$0xf]
    %v173 = vld [vmem:[%s3 + $0x34] sm:$0xf]
    %v174 = vld [vmem:[%s3 + $0x38] sm:$0xf]
    %v175 = vld [vmem:[%s3 + $0x3c] sm:$0xf]
    %v176 = vld [vmem:[%s4] sm:$0x1]
    %v178 = vperm.slane %v176, 0
    %v196 = vunpack.c.l.b16 %v160
    %v197 = vunpack.c.l.b16 %v161
    %v198 = vunpack.c.l.b16 %v162
    %v199 = vunpack.c.l.b16 %v163
    %v200 = vunpack.c.l.b16 %v164
    %v201 = vunpack.c.l.b16 %v165
    %v202 = vunpack.c.l.b16 %v166
    %v203 = vunpack.c.l.b16 %v167
    %v204 = vunpack.c.l.b16 %v168
    %v205 = vunpack.c.l.b16 %v169
    %v206 = vunpack.c.l.b16 %v170
    %v207 = vunpack.c.l.b16 %v171
    %v208 = vunpack.c.l.b16 %v172
    %v209 = vunpack.c.l.b16 %v173
    %v210 = vunpack.c.l.b16 %v174
    %v211 = vunpack.c.l.b16 %v175
    %v212 = vpack.c.b16 %v197, %v196
    %v213 = vpack.c.b16 %v199, %v198
    %v214 = vpack.c.b16 %v201, %v200
    %v215 = vpack.c.b16 %v203, %v202
    %v216 = vpack.c.b16 %v205, %v204
    %v217 = vpack.c.b16 %v207, %v206
    %v218 = vpack.c.b16 %v209, %v208
    %v219 = vpack.c.b16 %v211, %v210
    %228 = vmatpush.bf16.msra.mxu0 %v219
    %229 = vmatpush.bf16.msra.mxu0 %v218
    %230 = vmatpush.bf16.msra.mxu0 %v217
    %231 = vmatpush.bf16.msra.mxu0 %v216
    %232 = vmatpush.bf16.msra.mxu0 %v215
    %233 = vmatpush.bf16.msra.mxu0 %v214
    %234 = vmatpush.bf16.msra.mxu0 %v213
    %235 = vmatpush.bf16.msra.mxu0 %v212
    %236 = vmatmul.bf16.gmra.mxu0 %v152
    %v237 = vpop.f32.mrf.mxu0
    %v238 = vadd.f32 %v178, %v237
    %v239 = vpop.f32.mrf.mxu0
    %v240 = vadd.f32 %v178, %v239
    %241 = vmatmul.bf16.gmra.mxu0 %v153
    %v242 = vpop.f32.mrf.mxu0
    %v243 = vadd.f32 %v178, %v242
    %v244 = vpop.f32.mrf.mxu0
    %v245 = vadd.f32 %v178, %v244
    %246 = vmatmul.bf16.gmra.mxu0 %v154
    %v247 = vpop.f32.mrf.mxu0
    %v248 = vadd.f32 %v178, %v247
    %v249 = vpop.f32.mrf.mxu0
    %v250 = vadd.f32 %v178, %v249
    %251 = vmatmul.bf16.gmra.mxu0 %v155
    %v252 = vpop.f32.mrf.mxu0
    %v253 = vadd.f32 %v178, %v252
    %v254 = vpop.f32.mrf.mxu0
    %v255 = vadd.f32 %v178, %v254
    %256 = vmatmul.bf16.gmra.mxu0 %v156
    %v257 = vpop.f32.mrf.mxu0
    %v258 = vadd.f32 %v178, %v257
    %v259 = vpop.f32.mrf.mxu0
    %v260 = vadd.f32 %v178, %v259
    %261 = vmatmul.bf16.gmra.mxu0 %v157
    %v262 = vpop.f32.mrf.mxu0
    %v263 = vadd.f32 %v178, %v262
    %v264 = vpop.f32.mrf.mxu0
    %v265 = vadd.f32 %v178, %v264
    %266 = vmatmul.bf16.gmra.mxu0 %v158
    %v267 = vpop.f32.mrf.mxu0
    %v268 = vadd.f32 %v178, %v267
    %v269 = vpop.f32.mrf.mxu0
    %v270 = vadd.f32 %v178, %v269
    %271 = vmatmul.bf16.gmra.mxu0 %v159
    %v272 = vpop.f32.mrf.mxu0
    %v273 = vadd.f32 %v178, %v272
    %v274 = vpop.f32.mrf.mxu0
    %v275 = vadd.f32 %v178, %v274
    %276 = vdwg.mxu0
    %v277 = vmax.f32 %v238, 0.0
    %v278 = vmax.f32 %v240, 0.0
    %v279 = vmax.f32 %v243, 0.0
    %v280 = vmax.f32 %v245, 0.0
    %v281 = vmax.f32 %v248, 0.0
    %v282 = vmax.f32 %v250, 0.0
    %v283 = vmax.f32 %v253, 0.0
    %v284 = vmax.f32 %v255, 0.0
    %v285 = vmax.f32 %v258, 0.0
    %v286 = vmax.f32 %v260, 0.0
    %v287 = vmax.f32 %v263, 0.0
    %v288 = vmax.f32 %v265, 0.0
    %v289 = vmax.f32 %v268, 0.0
    %v290 = vmax.f32 %v270, 0.0
    %v291 = vmax.f32 %v273, 0.0
    %v292 = vmax.f32 %v275, 0.0
    %s293 = sld [smem:[#allocation2]]
    %v294 = vld [vmem:[%s5] sm:$0xff]
    %295 = vmatpush.xpose.msra.mxu0 %v292
    %296 = vmatpush.xpose.msra.mxu0 %v291
    %297 = vmatpush.xpose.msra.mxu0 %v290
    %298 = vmatpush.xpose.msra.mxu0 %v289
    %299 = vmatpush.xpose.msra.mxu0 %v288
    %300 = vmatpush.xpose.msra.mxu0 %v287
    %301 = vmatpush.xpose.msra.mxu0 %v286
    %302 = vmatpush.xpose.msra.mxu0 %v285
    %303 = vmatpush.xpose.msra.mxu0 %v284
    %304 = vmatpush.xpose.msra.mxu0 %v283
    %305 = vmatpush.xpose.msra.mxu0 %v282
    %306 = vmatpush.xpose.msra.mxu0 %v281
    %307 = vmatpush.xpose.msra.mxu0 %v280
    %308 = vmatpush.xpose.msra.mxu0 %v279
    %309 = vmatpush.xpose.msra.mxu0 %v278
    %310 = vmatpush.xpose.msra.mxu0 %v277
    %311 = vmatmul.f32.gmra.mxu0 %v294
    %v312 = vpop.f32.mrf.mxu0
    %v313 = vadd.f32 0.0, %v312
    %314 = vdwg.mxu0
    %v315 = vstv %s293
    %v316 = vadd.f32 %v313, %v315
    %v317 = vxor.u32 %v316, 2147483648
    %v318 = vmul.f32 %v317, 1.442695
    %v319 = vpow.pop %v318
    %v320 = vadd.f32 %v319, 1.0
    %v321 = vrcp.pop %v320
    %v322 = vmul.f32 %v320, %v321
    %v323 = vsub.f32 1.0, %v322
    %v324 = vmul.f32 %v321, %v323
    %v325 = vadd.f32 %v321, %v324
    %vm326 = vweird.f32 %v320
    %vm327 = vweird.f32 %v321
    %vm328 = vmor %vm326, %vm327
    %v329 = vsel %vm328, %v321, %v325
    %v330 = vand.u32 2147483647, %v320
    %vm331 = vcmp.eq.f32.partialorder %v330, 8.507059e+37
    %v332 = vand.u32 %v320, 2147483648
    %v333 = vor.u32 1.1754944e-38, %v332
    %v334 = vsel %vm331, %v333, %v329
    %v335 = vmul.f32 1.0, %v334
    %336 = vst [vmem:[#allocation3] sm:$0x1] %v335
    // Predicated region
    $region30: #{tpu_custom_call.1} parent=1 // pred_check
      _
    $region31: #{tpu_custom_call.1} parent=1 // pred_check_branch
      %338 = sbr.rel (0) target = $region33
    $region32: #{tpu_custom_call.1} parent=1 // pred_region
      %340 = vsyncadd [#allocation4], 0
      %s342 = sshll.u32 [#allocation3], 4
      %s343 = int_to_ptr.vmem [resolvable:$true] %s342
      %s344 = sshll.u32 %s7, 4
      %s345 = int_to_ptr.hbm [resolvable:$true] %s344
      %347 = dma.vmem_to_hbm [thread:$0]  %s343, 16, %s345, [#allocation4]
    $region33: #{tpu_custom_call.1} parent=1 // pred_fallthru
      _
    // Predicated region
    $region34: #{tpu_custom_call.1} parent=1 // pred_check
      _
    $region35: #{tpu_custom_call.1} parent=1 // pred_check_branch
      %349 = sbr.rel (0) target = $region37
    $region36: #{tpu_custom_call.1} parent=1 // pred_region
      %351 = dma.done [#allocation4], 16
    $region37: #{tpu_custom_call.1} parent=1 // pred_fallthru
      _
    %352 = vsyncpa [#allocation4], 1

</llo_original>
